<compile_context>
chip_gen: v5e
topology: v5e:2x2
jax: 0.10.0
libtpu: 0.0.40
codegen_flags: <defaults>
</compile_context>

<pallas_src>
import jax
import jax.numpy as jnp
from jax.experimental import pallas as pl
from jax.experimental.pallas import tpu as pltpu


def nsp_head_kernel(x_ref, w_ref, b_ref, o_ref):
    # x_ref: [TB, H] (VMEM), w_ref: [2, H] (VMEM, lane-dense along H),
    # b_ref: [2] (SMEM scalars), o_ref: [TB, 2] (VMEM).
    x = x_ref[...].astype(jnp.float32)     # keep elementwise math in f32 (v5e VPU has no bf16)
    w = w_ref[...].astype(jnp.float32)

    # Two logits on VPU (mul) + XLU (lane reduce); f32 accumulate; bias from SMEM scalars.
    l0 = jnp.sum(x * w[0:1, :], axis=-1, keepdims=True) + b_ref[0]   # [TB, 1]
    l1 = jnp.sum(x * w[1:2, :], axis=-1, keepdims=True) + b_ref[1]   # [TB, 1]

    o_ref[...] = jnp.concatenate([l0, l1], axis=-1).astype(o_ref.dtype)   # [TB, 2]


def nsp_head(pooled_output, weight, bias, *, block_b=512):
    """seq_relationship_score = pooled_output @ weight.T + bias

    pooled_output: [B, H]
    weight:        [2, H]   (PyTorch nn.Linear convention, passed as-is)
    bias:          [2]
    returns:       [B, 2]
    """
    B, H = pooled_output.shape
    assert weight.shape == (2, H)
    assert bias.shape == (2,)
    out_shape = jax.ShapeDtypeStruct((B, 2), pooled_output.dtype)

    if B <= block_b:
        # Single invocation: no grid, no pipelining. Whole arrays resident in VMEM,
        # bias scalars in SMEM.
        return pl.pallas_call(
            nsp_head_kernel,
            out_shape=out_shape,
            in_specs=[
                pl.BlockSpec(memory_space=pltpu.MemorySpace.VMEM),   # x  [B, H]
                pl.BlockSpec(memory_space=pltpu.MemorySpace.VMEM),   # W  [2, H]
                pl.BlockSpec(memory_space=pltpu.MemorySpace.SMEM),   # b  [2]
            ],
            out_specs=pl.BlockSpec(memory_space=pltpu.MemorySpace.VMEM),
        )(pooled_output, weight, bias)

    # Large-batch path: tile over B only; weight/bias untiled.
    # block_b=512 f32 => 2*512*H*4 bytes double-buffered (4 MiB at H=1024):
    # fits v5e's 16 MiB default scoped VMEM and v7x's 32 MiB with headroom.
    assert block_b % 8 == 0, "B tile must be a multiple of 8 for f32 sublane tiling"
    grid = (pl.cdiv(B, block_b),)
    return pl.pallas_call(
        nsp_head_kernel,
        out_shape=out_shape,
        grid=grid,
        in_specs=[
            pl.BlockSpec((block_b, H), lambda i: (i, 0)),            # x tile
            pl.BlockSpec((2, H), lambda i: (0, 0)),                  # W whole, constant block
            pl.BlockSpec(memory_space=pltpu.MemorySpace.SMEM),       # b scalars
        ],
        out_specs=pl.BlockSpec((block_b, 2), lambda i: (i, 0)),
        compiler_params=pltpu.CompilerParams(
            dimension_semantics=("parallel",),                       # sharded across TCs on v7x
        ),
    )(pooled_output, weight, bias)


if __name__ == "__main__":
    # Small config: batch=8, hidden=32 (BERT NSP head: Linear(hidden, 2)).
    batch, hidden = 8, 32

    key = jax.random.PRNGKey(0)
    k_x, k_w, k_b = jax.random.split(key, 3)

    pooled_output = jax.random.normal(k_x, (batch, hidden), dtype=jnp.float32)
    # Deterministic param init (mimics nn.Linear uniform init bounds).
    bound = 1.0 / (hidden ** 0.5)
    weight = jax.random.uniform(k_w, (2, hidden), jnp.float32, -bound, bound)
    bias = jax.random.uniform(k_b, (2,), jnp.float32, -bound, bound)

    # Small-B (no-grid) path.
    out = nsp_head(pooled_output, weight, bias)
    jax.block_until_ready(out)
    ref = pooled_output @ weight.T + bias
    assert out.shape == (batch, 2), out.shape
    assert jnp.allclose(out, ref, atol=1e-5, rtol=1e-5), "mismatch vs reference (small B)"

    # Also exercise the tiled large-B path (grid over B, "parallel").
    big_b = 1024
    x_big = jax.random.normal(k_x, (big_b, hidden), dtype=jnp.float32)
    out_big = nsp_head(x_big, weight, bias, block_b=256)
    jax.block_until_ready(out_big)
    ref_big = x_big @ weight.T + bias
    assert out_big.shape == (big_b, 2), out_big.shape
    assert jnp.allclose(out_big, ref_big, atol=1e-5, rtol=1e-5), "mismatch vs reference (large B)"

    print("KERNEL_OK")
</pallas_src>

<mosaic_0001>
module attributes {stable_mosaic.version = 11 : i64} {
  func.func @nsp_head_kernel(%arg0: memref<8x32xf32, #tpu.memory_space<vmem>>, %arg1: memref<2x32xf32, #tpu.memory_space<vmem>>, %arg2: memref<2xf32, #tpu.memory_space<smem>>, %arg3: memref<8x2xf32, #tpu.memory_space<vmem>>) attributes {dimension_semantics = [], scalar_prefetch = 0 : i64, scratch_operands = 0 : i64, tpu.core_type = #tpu.core_type<tc>} {
    %c0 = arith.constant 0 : index
    %c0_0 = arith.constant 0 : index
    %0 = vector.load %arg0[%c0, %c0_0] : memref<8x32xf32, #tpu.memory_space<vmem>>, vector<8x32xf32>
    %c0_1 = arith.constant 0 : index
    %c0_2 = arith.constant 0 : index
    %1 = vector.load %arg1[%c0_1, %c0_2] : memref<2x32xf32, #tpu.memory_space<vmem>>, vector<2x32xf32>
    %2 = vector.extract_strided_slice %1 {offsets = [0, 0], sizes = [1, 32], strides = [1, 1]} : vector<2x32xf32> to vector<1x32xf32>
    %3 = vector.broadcast %2 : vector<1x32xf32> to vector<8x32xf32>
    %4 = arith.mulf %0, %3 : vector<8x32xf32>
    %cst = arith.constant dense<0.000000e+00> : vector<8xf32>
    %5 = vector.multi_reduction <add>, %4, %cst [1] : vector<8x32xf32> to vector<8xf32>
    %6 = vector.shape_cast %5 : vector<8xf32> to vector<8x1xf32>
    %c0_3 = arith.constant 0 : index
    %7 = memref.load %arg2[%c0_3] : memref<2xf32, #tpu.memory_space<smem>>
    %8 = vector.broadcast %7 : f32 to vector<8x1xf32>
    %9 = arith.addf %6, %8 : vector<8x1xf32>
    %10 = vector.extract_strided_slice %1 {offsets = [1, 0], sizes = [1, 32], strides = [1, 1]} : vector<2x32xf32> to vector<1x32xf32>
    %11 = vector.broadcast %10 : vector<1x32xf32> to vector<8x32xf32>
    %12 = arith.mulf %0, %11 : vector<8x32xf32>
    %cst_4 = arith.constant dense<0.000000e+00> : vector<8xf32>
    %13 = vector.multi_reduction <add>, %12, %cst_4 [1] : vector<8x32xf32> to vector<8xf32>
    %14 = vector.shape_cast %13 : vector<8xf32> to vector<8x1xf32>
    %c1 = arith.constant 1 : index
    %15 = memref.load %arg2[%c1] : memref<2xf32, #tpu.memory_space<smem>>
    %16 = vector.broadcast %15 : f32 to vector<8x1xf32>
    %17 = arith.addf %14, %16 : vector<8x1xf32>
    %18 = tpu.concatenate %9, %17 in 1 : vector<8x1xf32>, vector<8x1xf32> -> vector<8x2xf32>
    %c0_5 = arith.constant 0 : index
    %c0_6 = arith.constant 0 : index
    %19 = vector.load %arg3[%c0_5, %c0_6] : memref<8x2xf32, #tpu.memory_space<vmem>>, vector<8x2xf32>
    tpu.vector_store %arg3[%c0_5, %c0_6], %18 {strides = array<i32>} : memref<8x2xf32, #tpu.memory_space<vmem>>, vector<8x2xf32>,
    return
  }
}

</mosaic_0001>

<llo_original>
// kernel: tpu_custom_call.1
$region0: #{tpu_custom_call.1}
  #allocation0 [shape = 'u32[]', space=smem, size = 0x4, offset = 0x4, fixed_abs, tag = 'smem constant byte address 0x4 - core index']
  #allocation1 [shape = 'u32[72,128]{1,0:T(1,128)}', space=vmem, size = 0x9000, scoped, tag = 'internal scratch']
  %s0 = inlined_call_operand.hbm [shape: f32[8,32], index: 0, kind: input, shape index: {}]
  %s1 = inlined_call_operand.hbm [shape: f32[2,32], index: 1, kind: input, shape index: {}]
  %s2 = inlined_call_operand.vmem [shape: f32[2], index: 2, kind: input, shape index: {}]
  %s3 = inlined_call_operand.vmem [shape: f32[8,2], index: 3, kind: output, shape index: {}]
  %s4 = sld [smem:[#allocation0]]
  $region34: #{tpu_custom_call.1} parent=0
    _
  %s6 = ssub.s32 1, %s4
  %s7 = scalar_select 0, %s6, %s4
  $region1: #{tpu_custom_call.1} parent=0
    #allocation2 [shape = 'u8[4096]{0}', space=vmem, size = 0x1000, scoped, tag = 'input window, operand 0, single buffered']
    #allocation3 [shape = 's32[1]{0}', space=sflag, size = 0x4, scoped, tag = 'scoped memory for tpu_custom_call.1']
    #allocation4 [shape = 's32[1]{0}', space=sflag, size = 0x4, scoped, tag = 'scoped memory for tpu_custom_call.1']
    #allocation5 [shape = 'u8[1024]{0}', space=vmem, size = 0x400, scoped, tag = 'input window, operand 1, single buffered']
    #allocation6 [shape = 's32[1]{0}', space=sflag, size = 0x4, scoped, tag = 'scoped memory for tpu_custom_call.1']
    #allocation7 [shape = 'u8[512]{0}', space=smem, size = 0x200, scoped, tag = 'input window, operand 2, single buffered']
    %8 = vsyncpa [#allocation3], 0
    %9 = vsyncpa [#allocation6], 0
    %10 = vsyncpa [#allocation4], 0
    // Predicated region
    $region2: #{tpu_custom_call.1} parent=1 // pred_check
      _
    $region3: #{tpu_custom_call.1} parent=1 // pred_check_branch
      %12 = sbr.rel (0) target = $region5
    $region4: #{tpu_custom_call.1} parent=1 // pred_region
      %14 = vsyncadd [#allocation3], 0
      %s16 = sshll.u32 %s0, 4
      %s17 = int_to_ptr.hbm [resolvable:$true] %s16
      %s18 = sshll.u32 [#allocation2], 4
      %s19 = int_to_ptr.vmem [resolvable:$true] %s18
      %21 = dma.hbm_to_vmem [thread:$0]  %s17, 128, %s19, [#allocation3]
    $region5: #{tpu_custom_call.1} parent=1 // pred_fallthru
      _
    // Predicated region
    $region6: #{tpu_custom_call.1} parent=1 // pred_check
      _
    $region7: #{tpu_custom_call.1} parent=1 // pred_check_branch
      %23 = sbr.rel (0) target = $region9
    $region8: #{tpu_custom_call.1} parent=1 // pred_region
      %25 = vsyncadd [#allocation6], 0
      %s27 = sshll.u32 %s1, 4
      %s28 = int_to_ptr.hbm [resolvable:$true] %s27
      %s29 = sshll.u32 [#allocation5], 4
      %s30 = int_to_ptr.vmem [resolvable:$true] %s29
      %32 = dma.hbm_to_vmem [thread:$0]  %s28, 32, %s30, [#allocation6]
    $region9: #{tpu_custom_call.1} parent=1 // pred_fallthru
      _
    // Predicated region
    $region10: #{tpu_custom_call.1} parent=1 // pred_check
      _
    $region11: #{tpu_custom_call.1} parent=1 // pred_check_branch
      %34 = sbr.rel (0) target = $region13
    $region12: #{tpu_custom_call.1} parent=1 // pred_region
      %36 = vsyncadd [#allocation4], 0
      %s38 = sshll.u32 %s2, 4
      %s39 = int_to_ptr.vmem [resolvable:$true] %s38
      %41 = dma.vmem_to_smem %s39, 16, [#allocation7], [#allocation4]
    $region13: #{tpu_custom_call.1} parent=1 // pred_fallthru
      _
    // Predicated region
    $region14: #{tpu_custom_call.1} parent=1 // pred_check
      _
    $region15: #{tpu_custom_call.1} parent=1 // pred_check_branch
      %43 = sbr.rel (0) target = $region17
    $region16: #{tpu_custom_call.1} parent=1 // pred_region
      %45 = dma.done [#allocation3], 128
    $region17: #{tpu_custom_call.1} parent=1 // pred_fallthru
      _
    // Predicated region
    $region18: #{tpu_custom_call.1} parent=1 // pred_check
      _
    $region19: #{tpu_custom_call.1} parent=1 // pred_check_branch
      %47 = sbr.rel (0) target = $region21
    $region20: #{tpu_custom_call.1} parent=1 // pred_region
      %49 = dma.done [#allocation6], 32
    $region21: #{tpu_custom_call.1} parent=1 // pred_fallthru
      _
    // Predicated region
    $region22: #{tpu_custom_call.1} parent=1 // pred_check
      _
    $region23: #{tpu_custom_call.1} parent=1 // pred_check_branch
      %51 = sbr.rel (0) target = $region25
    $region24: #{tpu_custom_call.1} parent=1 // pred_region
      %53 = dma.done [#allocation4], 16
    $region25: #{tpu_custom_call.1} parent=1 // pred_fallthru
      _
    %54 = sfence
    %v55 = vld [vmem:[#allocation2] sm:$0xff]
    %v56 = vld [vmem:[#allocation5] sm:$0x3]
    %v57 = vperm.slane %v56, 0
    %v58 = vmul.f32 %v55, %v57
    %vm59 = vcmask 261120
    %v60 = vsel %vm59, %v58, 0.0
    %61 = vadd.xlane.f32.xlu0 %v60
    %v62 = vpop.xlane.xlu0 %61
    %s63 = sld [smem:[#allocation7]]
    %v64 = vstv %s63
    %v65 = vadd.f32 %v62, %v64
    %v66 = vperm.slane %v56, 1
    %v67 = vmul.f32 %v55, %v66
    %v68 = vsel %vm59, %v67, 0.0
    %69 = vadd.xlane.f32.xlu0 %v68
    %v70 = vpop.xlane.xlu0 %69
    %s71 = sld [smem:[#allocation7 + $0x1]]
    %v72 = vstv %s71
    %v73 = vadd.f32 %v70, %v72
    %vm74 = vcmask 7168
    %v75 = vsel %vm74, %v65, %v73
    %vm76 = vcmask 15360
    %77 = vst.msk [vmem:[%s3] sm:$0xff] %vm76, %v75
    // Predicated region
    $region26: #{tpu_custom_call.1} parent=1 // pred_check
      _
    $region27: #{tpu_custom_call.1} parent=1 // pred_check_branch
      %79 = sbr.rel (0) target = $region29
    $region28: #{tpu_custom_call.1} parent=1 // pred_region
      _
    $region29: #{tpu_custom_call.1} parent=1 // pred_fallthru
      _
    // Predicated region
    $region30: #{tpu_custom_call.1} parent=1 // pred_check
      _
    $region31: #{tpu_custom_call.1} parent=1 // pred_check_branch
      %81 = sbr.rel (0) target = $region33
    $region32: #{tpu_custom_call.1} parent=1 // pred_region
      _
    $region33: #{tpu_custom_call.1} parent=1 // pred_fallthru
      _
    %82 = vsyncpa [#allocation3], 1
    %83 = vsyncpa [#allocation6], 1
    %84 = vsyncpa [#allocation4], 1

</llo_original>
